<compile_context>
chip_gen: v7x
topology: tpu7x:2x2x1
jax: 0.10.0
libtpu: 0.0.40
codegen_flags: <defaults>
</compile_context>

<pallas_src>
import functools
import math

import jax
import jax.numpy as jnp
from jax import lax
from jax.experimental import pallas as pl
from jax.experimental.pallas import tpu as pltpu

_LANES = 128


def _layernorm_kernel(x_ref, w_ref, b_ref, o_ref, *, eps, inv_h):
    """Row-wise LayerNorm, fused single-pass mean / E[x^2]."""
    x = x_ref[...].astype(jnp.float32)
    mean = jnp.sum(x, axis=-1, keepdims=True) * inv_h
    ex2 = jnp.sum(x * x, axis=-1, keepdims=True) * inv_h
    var = jnp.maximum(ex2 - mean * mean, 0.0)      # clamp: one-pass form can cancel < 0
    inv = lax.rsqrt(var + eps)                     # EUP op, off the VPU critical slot
    w = w_ref[...].astype(jnp.float32)
    b = b_ref[...].astype(jnp.float32)
    o_ref[...] = ((x - mean) * inv * w + b).astype(o_ref.dtype)


def _layernorm_packed_kernel(x_ref, w_ref, b_ref, seg_ref, o_ref, *, eps, inv_h):
    """Lane-dense variant for small hidden: the wrapper folded k = 128 // H rows into
    the lane dim.  seg_ref is a (kH, kH) fp32 block-diagonal ones matrix, so x @ seg
    both reduces each H-segment and broadcasts the sum back to every lane of that
    segment in a single (tiny) MXU op — vregs and stores stay fully dense."""
    x = x_ref[...].astype(jnp.float32)
    seg = seg_ref[...]
    mean = jnp.dot(x, seg, preferred_element_type=jnp.float32) * inv_h
    ex2 = jnp.dot(x * x, seg, preferred_element_type=jnp.float32) * inv_h
    var = jnp.maximum(ex2 - mean * mean, 0.0)
    inv = lax.rsqrt(var + eps)
    w = w_ref[...].astype(jnp.float32)             # already tiled to k*H in the wrapper
    b = b_ref[...].astype(jnp.float32)
    o_ref[...] = ((x - mean) * inv * w + b).astype(o_ref.dtype)


def _tpu_vmem_capacity_bytes():
    try:
        return int(pltpu.get_tpu_info().vmem_capacity_bytes)
    except Exception:
        return 64 << 20        # conservative fallback (v7x per-core VMEM)


def _choose_row_tile(rows, hidden, itemsize, vmem_capacity):
    """Row tile:
       - MiB-scale input blocks (~4 MiB / step) so the ~0.35 us per-step overhead is
         amortized and streaming runs near the HBM roofline,
       - capped by a generation-aware VMEM budget (double-buffered I/O + fp32 temps),
       - at least 2 grid steps when possible (pipeline depth, v7x 2-TC balance),
       - sublane-aligned (16 rows for 16-bit dtypes, else 8)."""
    if rows <= 8:
        return rows                                    # single full block (tiny input)
    per_row = hidden * (4 * itemsize + 2 * 4)          # dbl-buffered in+out + ~2 fp32 temps
    budget = max(16 << 20, int(vmem_capacity * 0.45))  # ~57 MiB on 128 MiB chips, ~28 on v7x
    max_rows_vmem = max(8, budget // max(per_row, 1))
    target_rows = max(8, (4 << 20) // max(hidden * itemsize, 1))   # ~4 MiB input / step
    tile = min(max_rows_vmem, target_rows, pl.cdiv(rows, 2))       # keep >= 2 grid steps
    align = 16 if itemsize == 2 else 8
    tile = max(align, (tile // align) * align)
    return min(tile, rows)


def _vmem_limit_bytes(row_tile, hidden, itemsize, vmem_capacity, packed):
    io = 2 * 2 * row_tile * hidden * itemsize          # double-buffered in + out blocks
    work = 2 * row_tile * hidden * 4                   # fp32 live arrays in the body
    params = 2 * 2 * hidden * 4                        # resident weight + bias
    if packed:
        params += 2 * hidden * hidden * 4              # resident segment-sum matrix
    est = io + work + params + (4 << 20)               # headroom
    # v7x (64 MiB physical): leave compiler internal-scratch headroom; v5e/v6e: use it.
    cap = (44 << 20) if vmem_capacity <= (64 << 20) else (100 << 20)
    return int(min(max(est, 32 << 20), cap))


def layer_norm_pallas(x, weight=None, bias=None, *, eps=1e-5, row_tile=None):
    """LayerNorm over the last dim of x; fp32 compute, output cast back to x.dtype."""
    orig_shape = x.shape
    orig_dtype = x.dtype
    hidden = orig_shape[-1]
    rows = math.prod(orig_shape[:-1])

    if weight is None:                                  # elementwise_affine=False
        weight = jnp.ones((hidden,), dtype=jnp.float32)
    if bias is None:
        bias = jnp.zeros((hidden,), dtype=jnp.float32)
    w = weight.reshape(1, hidden).astype(jnp.float32)
    b = bias.reshape(1, hidden).astype(jnp.float32)

    # Lane-dense packing for small hidden: fold k = 128 // H rows into the lane dim.
    pack = 1
    if hidden < _LANES and _LANES % hidden == 0 and rows % (_LANES // hidden) == 0:
        pack = _LANES // hidden

    rows_eff = rows // pack
    hidden_eff = hidden * pack
    x2 = x.reshape(rows_eff, hidden_eff)                # free reshape on contiguous HBM

    itemsize = jnp.dtype(orig_dtype).itemsize
    vmem_capacity = _tpu_vmem_capacity_bytes()
    if row_tile is None:
        row_tile = _choose_row_tile(rows_eff, hidden_eff, itemsize, vmem_capacity)
    grid_rows = pl.cdiv(rows_eff, row_tile)             # no pad: Pallas masks edge block

    inv_h = 1.0 / float(hidden)
    x_spec = pl.BlockSpec((row_tile, hidden_eff), lambda i: (i, 0))
    p_spec = pl.BlockSpec((1, hidden_eff), lambda i: (0, 0))       # VMEM-resident params

    mm_flops = 4 * rows_eff * hidden_eff * hidden_eff if pack > 1 else 0
    cost = pl.CostEstimate(
        flops=10 * rows * hidden + mm_flops,
        transcendentals=rows,
        bytes_accessed=2 * rows * hidden * itemsize + 2 * hidden * 4,
    )

    if pack > 1:
        w_in = jnp.tile(w, (1, pack))
        b_in = jnp.tile(b, (1, pack))
        seg = jnp.kron(jnp.eye(pack, dtype=jnp.float32),
                       jnp.ones((hidden, hidden), dtype=jnp.float32))
        kernel = functools.partial(_layernorm_packed_kernel, eps=eps, inv_h=inv_h)
        in_specs = [x_spec, p_spec, p_spec,
                    pl.BlockSpec((hidden_eff, hidden_eff), lambda i: (0, 0))]
        operands = (x2, w_in, b_in, seg)
    else:
        kernel = functools.partial(_layernorm_kernel, eps=eps, inv_h=inv_h)
        in_specs = [x_spec, p_spec, p_spec]
        operands = (x2, w, b)

    out = pl.pallas_call(
        kernel,
        out_shape=jax.ShapeDtypeStruct((rows_eff, hidden_eff), orig_dtype),
        grid_spec=pltpu.PrefetchScalarGridSpec(
            num_scalar_prefetch=0,
            grid=(grid_rows,),
            in_specs=in_specs,
            out_specs=x_spec,
        ),
        compiler_params=pltpu.CompilerParams(
            dimension_semantics=("parallel",),
            vmem_limit_bytes=_vmem_limit_bytes(row_tile, hidden_eff, itemsize,
                                               vmem_capacity, pack > 1),
        ),
        cost_estimate=cost,
    )(*operands)

    return out.reshape(orig_shape)


def _reference(x, weight, bias, eps):
    xf = x.astype(jnp.float32)
    mean = jnp.mean(xf, axis=-1, keepdims=True)
    var = jnp.mean((xf - mean) ** 2, axis=-1, keepdims=True)
    y = (xf - mean) / jnp.sqrt(var + eps)
    y = y * weight.astype(jnp.float32) + bias.astype(jnp.float32)
    return y.astype(x.dtype)


if __name__ == "__main__":
    eps = 1e-5
    key = jax.random.PRNGKey(0)

    # Check 1: batch=2, seq=8, hidden=32, bf16 I/O -> lane-dense packed path (k=4).
    B, S, H = 2, 8, 32
    x = jax.random.normal(key, (B, S, H), dtype=jnp.float32).astype(jnp.bfloat16)
    weight = jnp.ones((H,), dtype=jnp.float32)     # nn.LayerNorm init
    bias = jnp.zeros((H,), dtype=jnp.float32)

    out = jax.block_until_ready(layer_norm_pallas(x, weight, bias, eps=eps))
    ref = _reference(x, weight, bias, eps)
    assert out.dtype == x.dtype and out.shape == x.shape
    assert jnp.allclose(out.astype(jnp.float32), ref.astype(jnp.float32),
                        atol=1e-2, rtol=1e-2)

    # Check 2: rows not a multiple of pack or tile (unpacked path + masked edge block),
    # fp32 I/O dtype.
    x_odd = jax.random.normal(jax.random.PRNGKey(1), (3, 5, H), dtype=jnp.float32)
    out_odd = jax.block_until_ready(layer_norm_pallas(x_odd, weight, bias, eps=eps))
    ref_odd = _reference(x_odd, weight, bias, eps)
    assert out_odd.shape == x_odd.shape
    assert jnp.allclose(out_odd, ref_odd, atol=2e-4, rtol=2e-4)

    # Check 3: packed path with multiple grid steps and a partial edge block.
    x_big = jax.random.normal(jax.random.PRNGKey(2), (4, 72, H),
                              dtype=jnp.float32).astype(jnp.bfloat16)
    out_big = jax.block_until_ready(layer_norm_pallas(x_big, weight, bias, eps=eps))
    ref_big = _reference(x_big, weight, bias, eps)
    assert out_big.shape == x_big.shape and out_big.dtype == x_big.dtype
    assert jnp.allclose(out_big.astype(jnp.float32), ref_big.astype(jnp.float32),
                        atol=1e-2, rtol=1e-2)

    print("KERNEL_OK")
</pallas_src>

<mosaic_0001>
module attributes {stable_mosaic.version = 11 : i64} {
  func.func @_layernorm_packed_kernel(%arg0: i32, %arg1: memref<4x128xbf16, #tpu.memory_space<vmem>>, %arg2: memref<1x128xf32, #tpu.memory_space<vmem>>, %arg3: memref<1x128xf32, #tpu.memory_space<vmem>>, %arg4: memref<128x128xf32, #tpu.memory_space<vmem>>, %arg5: memref<4x128xbf16, #tpu.memory_space<vmem>>) attributes {dimension_semantics = [#tpu.dimension_semantics<parallel>], iteration_bounds = array<i64: 1>, scalar_prefetch = 0 : i64, scratch_operands = 0 : i64, tpu.core_type = #tpu.core_type<tc>, window_params = [{transform_indices = @transform_0, window_bounds = array<i64: 4, 128>}, {pipeline_mode = #tpu.pipeline_mode<synchronous>, transform_indices = @transform_1, window_bounds = array<i64: 1, 128>}, {pipeline_mode = #tpu.pipeline_mode<synchronous>, transform_indices = @transform_2, window_bounds = array<i64: 1, 128>}, {pipeline_mode = #tpu.pipeline_mode<synchronous>, transform_indices = @transform_3, window_bounds = array<i64: 128, 128>}, {transform_indices = @transform_4, window_bounds = array<i64: 4, 128>}]} {
    %c0 = arith.constant 0 : index
    %c0_0 = arith.constant 0 : index
    %0 = vector.load %arg1[%c0, %c0_0] : memref<4x128xbf16, #tpu.memory_space<vmem>>, vector<4x128xbf16>
    %1 = arith.extf %0 : vector<4x128xbf16> to vector<4x128xf32>
    %c0_1 = arith.constant 0 : index
    %c0_2 = arith.constant 0 : index
    %2 = vector.load %arg4[%c0_1, %c0_2] : memref<128x128xf32, #tpu.memory_space<vmem>>, vector<128x128xf32>
    %cst = arith.constant dense<0.000000e+00> : vector<4x128xf32>
    %3 = tpu.matmul %1, %2, %cst {dimension_numbers = #tpu.dot_dimension_numbers<[1], [0], [0], [1], [0, 0, 1, 1], [], []>} : vector<4x128xf32>, vector<128x128xf32>, vector<4x128xf32> -> vector<4x128xf32>
    %cst_3 = arith.constant 3.125000e-02 : f32
    %4 = vector.broadcast %cst_3 : f32 to vector<4x128xf32>
    %5 = arith.mulf %3, %4 : vector<4x128xf32>
    %6 = arith.mulf %1, %1 : vector<4x128xf32>
    %cst_4 = arith.constant dense<0.000000e+00> : vector<4x128xf32>
    %7 = tpu.matmul %6, %2, %cst_4 {dimension_numbers = #tpu.dot_dimension_numbers<[1], [0], [0], [1], [0, 0, 1, 1], [], []>} : vector<4x128xf32>, vector<128x128xf32>, vector<4x128xf32> -> vector<4x128xf32>
    %cst_5 = arith.constant 3.125000e-02 : f32
    %8 = vector.broadcast %cst_5 : f32 to vector<4x128xf32>
    %9 = arith.mulf %7, %8 : vector<4x128xf32>
    %10 = arith.mulf %5, %5 : vector<4x128xf32>
    %11 = arith.subf %9, %10 : vector<4x128xf32>
    %cst_6 = arith.constant 0.000000e+00 : f32
    %12 = vector.broadcast %cst_6 : f32 to vector<4x128xf32>
    %13 = arith.maximumf %11, %12 : vector<4x128xf32>
    %cst_7 = arith.constant 9.99999974E-6 : f32
    %14 = vector.broadcast %cst_7 : f32 to vector<4x128xf32>
    %15 = arith.addf %13, %14 : vector<4x128xf32>
    %16 = math.rsqrt %15 : vector<4x128xf32>
    %c0_8 = arith.constant 0 : index
    %c0_9 = arith.constant 0 : index
    %17 = vector.load %arg2[%c0_8, %c0_9] : memref<1x128xf32, #tpu.memory_space<vmem>>, vector<1x128xf32>
    %c0_10 = arith.constant 0 : index
    %c0_11 = arith.constant 0 : index
    %18 = vector.load %arg3[%c0_10, %c0_11] : memref<1x128xf32, #tpu.memory_space<vmem>>, vector<1x128xf32>
    %19 = arith.subf %1, %5 : vector<4x128xf32>
    %20 = arith.mulf %19, %16 : vector<4x128xf32>
    %21 = vector.broadcast %17 : vector<1x128xf32> to vector<4x128xf32>
    %22 = arith.mulf %20, %21 : vector<4x128xf32>
    %23 = vector.broadcast %18 : vector<1x128xf32> to vector<4x128xf32>
    %24 = arith.addf %22, %23 : vector<4x128xf32>
    %25 = arith.truncf %24 : vector<4x128xf32> to vector<4x128xbf16>
    %c0_12 = arith.constant 0 : index
    %c0_13 = arith.constant 0 : index
    %26 = vector.load %arg5[%c0_12, %c0_13] : memref<4x128xbf16, #tpu.memory_space<vmem>>, vector<4x128xbf16>
    tpu.vector_store %arg5[%c0_12, %c0_13], %25 {strides = array<i32>} : memref<4x128xbf16, #tpu.memory_space<vmem>>, vector<4x128xbf16>,
    return
  }
  func.func @transform_0(%arg0: i32) -> (i32, i32) {
    %c0_i32 = arith.constant 0 : i32
    %c0_i32_0 = arith.constant 0 : i32
    return %arg0, %c0_i32 : i32, i32
  }
  func.func @transform_1(%arg0: i32) -> (i32, i32) {
    %c0_i32 = arith.constant 0 : i32
    %c0_i32_0 = arith.constant 0 : i32
    %c0_i32_1 = arith.constant 0 : i32
    return %c0_i32, %c0_i32_0 : i32, i32
  }
  func.func @transform_2(%arg0: i32) -> (i32, i32) {
    %c0_i32 = arith.constant 0 : i32
    %c0_i32_0 = arith.constant 0 : i32
    %c0_i32_1 = arith.constant 0 : i32
    return %c0_i32, %c0_i32_0 : i32, i32
  }
  func.func @transform_3(%arg0: i32) -> (i32, i32) {
    %c0_i32 = arith.constant 0 : i32
    %c0_i32_0 = arith.constant 0 : i32
    %c0_i32_1 = arith.constant 0 : i32
    return %c0_i32, %c0_i32_0 : i32, i32
  }
  func.func @transform_4(%arg0: i32) -> (i32, i32) {
    %c0_i32 = arith.constant 0 : i32
    %c0_i32_0 = arith.constant 0 : i32
    return %arg0, %c0_i32 : i32, i32
  }
}

</mosaic_0001>

<llo_original>
// kernel: tpu_custom_call.1
$region0: #{tpu_custom_call.1}
  #allocation0 [shape = 'u32[]', space=smem, size = 0x4, offset = 0x4, fixed_abs, tag = 'smem constant byte address 0x4 - core index']
  #allocation1 [shape = 'u32[144,128]{1,0:T(1,128)}', space=vmem, size = 0x12000, scoped, tag = 'internal scratch']
  %s0 = inlined_call_operand.hbm [shape: bf16[4,128], index: 0, kind: input, shape index: {}]
  %s1 = inlined_call_operand.vmem [shape: f32[1,128], index: 1, kind: input, shape index: {}]
  %s2 = inlined_call_operand.vmem [shape: f32[1,128], index: 2, kind: input, shape index: {}]
  %s3 = inlined_call_operand.hbm [shape: f32[128,128], index: 3, kind: input, shape index: {}]
  %s4 = inlined_call_operand.hbm [shape: bf16[4,128], index: 4, kind: output, shape index: {}]
  %s5 = sld [smem:[#allocation0]]
  $region34: #{tpu_custom_call.1} parent=0
    _
  %s7 = ssub.s32 1, %s5
  %s8 = scalar_select 0, %s7, %s5
  $region1: #{tpu_custom_call.1} parent=0
    #allocation2 [shape = 'u8[1024]{0}', space=vmem, size = 0x400, scoped, tag = 'input window, operand 0, single buffered']
    #allocation3 [shape = 's32[1]{0}', space=sflag, size = 0x4, scoped, tag = 'scoped memory for tpu_custom_call.1']
    #allocation4 [shape = 's32[1]{0}', space=sflag, size = 0x4, scoped, tag = 'scoped memory for tpu_custom_call.1']
    #allocation5 [shape = 'u8[65536]{0}', space=vmem, size = 0x10000, scoped, tag = 'input window, operand 3, single buffered']
    #allocation6 [shape = 's32[1]{0}', space=sflag, size = 0x4, scoped, tag = 'scoped memory for tpu_custom_call.1']
    #allocation7 [shape = 'u8[1024]{0}', space=vmem, size = 0x400, scoped, tag = 'output window, operand 0, single buffered']
    %9 = vsyncpa [#allocation3], 0
    %10 = vsyncpa [#allocation6], 0
    %11 = vsyncpa [#allocation4], 0
    // Predicated region
    $region2: #{tpu_custom_call.1} parent=1 // pred_check
      _
    $region3: #{tpu_custom_call.1} parent=1 // pred_check_branch
      %13 = sbr.rel (0) target = $region5
    $region4: #{tpu_custom_call.1} parent=1 // pred_region
      %s15 = ssub.s32 32, 32
      %16 = vsyncadd [#allocation3], %s15
      %s18 = sshll.u32 [#allocation2], 4
      %s19 = int_to_ptr.vmem [resolvable:$true] %s18
      %21 = dma.hbm_to_vmem [thread:$0]  %s0, 32, %s19, [#allocation3]
    $region5: #{tpu_custom_call.1} parent=1 // pred_fallthru
      _
    // Predicated region
    $region6: #{tpu_custom_call.1} parent=1 // pred_check
      _
    $region7: #{tpu_custom_call.1} parent=1 // pred_check_branch
      %23 = sbr.rel (0) target = $region9
    $region8: #{tpu_custom_call.1} parent=1 // pred_region
      _
    $region9: #{tpu_custom_call.1} parent=1 // pred_fallthru
      _
    // Predicated region
    $region10: #{tpu_custom_call.1} parent=1 // pred_check
      _
    $region11: #{tpu_custom_call.1} parent=1 // pred_check_branch
      %25 = sbr.rel (0) target = $region13
    $region12: #{tpu_custom_call.1} parent=1 // pred_region
      _
    $region13: #{tpu_custom_call.1} parent=1 // pred_fallthru
      _
    // Predicated region
    $region14: #{tpu_custom_call.1} parent=1 // pred_check
      _
    $region15: #{tpu_custom_call.1} parent=1 // pred_check_branch
      %27 = sbr.rel (0) target = $region17
    $region16: #{tpu_custom_call.1} parent=1 // pred_region
      %s29 = ssub.s32 2048, 2048
      %30 = vsyncadd [#allocation6], %s29
      %s31 = sshll.u32 [#allocation5], 4
      %s32 = int_to_ptr.vmem [resolvable:$true] %s31
      %37 = dma.hbm_to_vmem [thread:$0]  %s3, 2048, %s32, [#allocation6], 128, 128, 8
    $region17: #{tpu_custom_call.1} parent=1 // pred_fallthru
      _
    // Predicated region
    $region18: #{tpu_custom_call.1} parent=1 // pred_check
      _
    $region19: #{tpu_custom_call.1} parent=1 // pred_check_branch
      %39 = sbr.rel (0) target = $region21
    $region20: #{tpu_custom_call.1} parent=1 // pred_region
      %40 = dma.done [#allocation3], 32
    $region21: #{tpu_custom_call.1} parent=1 // pred_fallthru
      _
    // Predicated region
    $region22: #{tpu_custom_call.1} parent=1 // pred_check
      _
    $region23: #{tpu_custom_call.1} parent=1 // pred_check_branch
      %42 = sbr.rel (0) target = $region25
    $region24: #{tpu_custom_call.1} parent=1 // pred_region
      %43 = dma.done [#allocation6], 2048
    $region25: #{tpu_custom_call.1} parent=1 // pred_fallthru
      _
    %v44 = vld [vmem:[#allocation2] sm:$0x3]
    %v45 = vunpack.c.l.bf16 %v44
    %v46 = vld [vmem:[#allocation5] sm:$0xff]
    %v47 = vld [vmem:[#allocation5 + $0x8] sm:$0xff]
    %v48 = vld [vmem:[#allocation5 + $0x10] sm:$0xff]
    %v49 = vld [vmem:[#allocation5 + $0x18] sm:$0xff]
    %v50 = vld [vmem:[#allocation5 + $0x20] sm:$0xff]
    %v51 = vld [vmem:[#allocation5 + $0x28] sm:$0xff]
    %v52 = vld [vmem:[#allocation5 + $0x30] sm:$0xff]
    %v53 = vld [vmem:[#allocation5 + $0x38] sm:$0xff]
    %v54 = vld [vmem:[#allocation5 + $0x40] sm:$0xff]
    %v55 = vld [vmem:[#allocation5 + $0x48] sm:$0xff]
    %v56 = vld [vmem:[#allocation5 + $0x50] sm:$0xff]
    %v57 = vld [vmem:[#allocation5 + $0x58] sm:$0xff]
    %v58 = vld [vmem:[#allocation5 + $0x60] sm:$0xff]
    %v59 = vld [vmem:[#allocation5 + $0x68] sm:$0xff]
    %v60 = vld [vmem:[#allocation5 + $0x70] sm:$0xff]
    %v61 = vld [vmem:[#allocation5 + $0x78] sm:$0xff]
    %62 = vmatprep.subr.mxu0 0.0
    %63 = vmatpush1.msra.mxu0 %v46
    %64 = vmatprep.subr.mxu0 0.0
    %65 = vmatpush1.msra.mxu0 %v47
    %66 = vmatprep.subr.mxu0 0.0
    %67 = vmatpush1.msra.mxu0 %v48
    %68 = vmatprep.subr.mxu0 0.0
    %69 = vmatpush1.msra.mxu0 %v49
    %70 = vmatprep.subr.mxu0 0.0
    %71 = vmatpush1.msra.mxu0 %v50
    %72 = vmatprep.subr.mxu0 0.0
    %73 = vmatpush1.msra.mxu0 %v51
    %74 = vmatprep.subr.mxu0 0.0
    %75 = vmatpush1.msra.mxu0 %v52
    %76 = vmatprep.subr.mxu0 0.0
    %77 = vmatpush1.msra.mxu0 %v53
    %78 = vmatprep.subr.mxu0 0.0
    %79 = vmatpush1.msra.mxu0 %v54
    %80 = vmatprep.subr.mxu0 0.0
    %81 = vmatpush1.msra.mxu0 %v55
    %82 = vmatprep.subr.mxu0 0.0
    %83 = vmatpush1.msra.mxu0 %v56
    %84 = vmatprep.subr.mxu0 0.0
    %85 = vmatpush1.msra.mxu0 %v57
    %86 = vmatprep.subr.mxu0 0.0
    %87 = vmatpush1.msra.mxu0 %v58
    %88 = vmatprep.subr.mxu0 0.0
    %89 = vmatpush1.msra.mxu0 %v59
    %90 = vmatprep.subr.mxu0 0.0
    %91 = vmatpush1.msra.mxu0 %v60
    %92 = vmatprep.subr.mxu0 0.0
    %93 = vmatpush1.msra.mxu0 %v61
    %94 = vmatprep.subr.mxu0 0.0
    %95 = vmatpush1.msra.mxu0 0.0
    %96 = vmatprep.subr.mxu0 0.0
    %97 = vmatpush1.msra.mxu0 0.0
    %98 = vmatprep.subr.mxu0 0.0
    %99 = vmatpush1.msra.mxu0 0.0
    %100 = vmatprep.subr.mxu0 0.0
    %101 = vmatpush1.msra.mxu0 0.0
    %102 = vmatprep.subr.mxu0 0.0
    %103 = vmatpush1.msra.mxu0 0.0
    %104 = vmatprep.subr.mxu0 0.0
    %105 = vmatpush1.msra.mxu0 0.0
    %106 = vmatprep.subr.mxu0 0.0
    %107 = vmatpush1.msra.mxu0 0.0
    %108 = vmatprep.subr.mxu0 0.0
    %109 = vmatpush1.msra.mxu0 0.0
    %110 = vmatprep.subr.mxu0 0.0
    %111 = vmatpush1.msra.mxu0 0.0
    %112 = vmatprep.subr.mxu0 0.0
    %113 = vmatpush1.msra.mxu0 0.0
    %114 = vmatprep.subr.mxu0 0.0
    %115 = vmatpush1.msra.mxu0 0.0
    %116 = vmatprep.subr.mxu0 0.0
    %117 = vmatpush1.msra.mxu0 0.0
    %118 = vmatprep.subr.mxu0 0.0
    %119 = vmatpush1.msra.mxu0 0.0
    %120 = vmatprep.subr.mxu0 0.0
    %121 = vmatpush1.msra.mxu0 0.0
    %122 = vmatprep.subr.mxu0 0.0
    %123 = vmatpush1.msra.mxu0 0.0
    %124 = vmatprep.subr.mxu0 0.0
    %125 = vmatpush1.msra.mxu0 0.0
    %126 = vmatprep.mubr.f32.mxu0 0.0
    %127 = vmatmul.mubr.f32.gmra.mrb[0].mxu0 %v45
    %v128 = vpop.f32.mrb[0].mxu0
    %v129 = vadd.f32 0.0, %v128
    %v130 = vpop.f32.mrb[0].mxu0
    %131 = vdwg.mxu0
    %v132 = vmul.f32 %v129, 0.03125
    %v133 = vmul.f32 %v45, %v45
    %134 = vmatprep.subr.mxu0 0.0
    %135 = vmatpush1.msra.mxu0 %v46
    %136 = vmatprep.subr.mxu0 0.0
    %137 = vmatpush1.msra.mxu0 %v47
    %138 = vmatprep.subr.mxu0 0.0
    %139 = vmatpush1.msra.mxu0 %v48
    %140 = vmatprep.subr.mxu0 0.0
    %141 = vmatpush1.msra.mxu0 %v49
    %142 = vmatprep.subr.mxu0 0.0
    %143 = vmatpush1.msra.mxu0 %v50
    %144 = vmatprep.subr.mxu0 0.0
    %145 = vmatpush1.msra.mxu0 %v51
    %146 = vmatprep.subr.mxu0 0.0
    %147 = vmatpush1.msra.mxu0 %v52
    %148 = vmatprep.subr.mxu0 0.0
    %149 = vmatpush1.msra.mxu0 %v53
    %150 = vmatprep.subr.mxu0 0.0
    %151 = vmatpush1.msra.mxu0 %v54
    %152 = vmatprep.subr.mxu0 0.0
    %153 = vmatpush1.msra.mxu0 %v55
    %154 = vmatprep.subr.mxu0 0.0
    %155 = vmatpush1.msra.mxu0 %v56
    %156 = vmatprep.subr.mxu0 0.0
    %157 = vmatpush1.msra.mxu0 %v57
    %158 = vmatprep.subr.mxu0 0.0
    %159 = vmatpush1.msra.mxu0 %v58
    %160 = vmatprep.subr.mxu0 0.0
    %161 = vmatpush1.msra.mxu0 %v59
    %162 = vmatprep.subr.mxu0 0.0
    %163 = vmatpush1.msra.mxu0 %v60
    %164 = vmatprep.subr.mxu0 0.0
    %165 = vmatpush1.msra.mxu0 %v61
    %166 = vmatprep.subr.mxu0 0.0
    %167 = vmatpush1.msra.mxu0 0.0
    %168 = vmatprep.subr.mxu0 0.0
    %169 = vmatpush1.msra.mxu0 0.0
    %170 = vmatprep.subr.mxu0 0.0
    %171 = vmatpush1.msra.mxu0 0.0
    %172 = vmatprep.subr.mxu0 0.0
    %173 = vmatpush1.msra.mxu0 0.0
    %174 = vmatprep.subr.mxu0 0.0
    %175 = vmatpush1.msra.mxu0 0.0
    %176 = vmatprep.subr.mxu0 0.0
    %177 = vmatpush1.msra.mxu0 0.0
    %178 = vmatprep.subr.mxu0 0.0
    %179 = vmatpush1.msra.mxu0 0.0
    %180 = vmatprep.subr.mxu0 0.0
    %181 = vmatpush1.msra.mxu0 0.0
    %182 = vmatprep.subr.mxu0 0.0
    %183 = vmatpush1.msra.mxu0 0.0
    %184 = vmatprep.subr.mxu0 0.0
    %185 = vmatpush1.msra.mxu0 0.0
    %186 = vmatprep.subr.mxu0 0.0
    %187 = vmatpush1.msra.mxu0 0.0
    %188 = vmatprep.subr.mxu0 0.0
    %189 = vmatpush1.msra.mxu0 0.0
    %190 = vmatprep.subr.mxu0 0.0
    %191 = vmatpush1.msra.mxu0 0.0
    %192 = vmatprep.subr.mxu0 0.0
    %193 = vmatpush1.msra.mxu0 0.0
    %194 = vmatprep.subr.mxu0 0.0
    %195 = vmatpush1.msra.mxu0 0.0
    %196 = vmatprep.subr.mxu0 0.0
    %197 = vmatpush1.msra.mxu0 0.0
    %198 = vmatprep.mubr.f32.mxu0 0.0
    %199 = vmatmul.mubr.f32.gmra.mrb[0].mxu0 %v133
    %v200 = vpop.f32.mrb[0].mxu0
    %v201 = vadd.f32 0.0, %v200
    %v202 = vpop.f32.mrb[0].mxu0
    %203 = vdwg.mxu0
    %v204 = vmul.f32 %v201, 0.03125
    %v205 = vmul.f32 %v132, %v132
    %v206 = vsub.f32 %v204, %v205
    %v207 = vmax.f32 %v206, 0.0
    %v208 = vadd.f32 %v207, 1e-05
    %v209 = vrsqrt.pop %v208
    %v210 = vld [vmem:[%s1] sm:$0x1]
    %v211 = vld [vmem:[%s2] sm:$0x1]
    %v212 = vsub.f32 %v45, %v132
    %v213 = vmul.f32 %v212, %v209
    %v215 = vlaneseq
    %v216 = vshrl.u32 %v215, 7
    %v217 = vsub.s32 0, %v216
    %v218 = vrot.slane %v210, %v217
    %v220 = vmul.f32 %v213, %v218
    %v222 = vlaneseq
    %v223 = vshrl.u32 %v222, 7
    %v224 = vsub.s32 0, %v223
    %v225 = vrot.slane %v211, %v224
    %v227 = vadd.f32 %v220, %v225
    %v228 = vpack.c.bf16 %v227, %v227
    %229 = vst [vmem:[#allocation7] sm:$0x3] %v228
    // Predicated region
    $region26: #{tpu_custom_call.1} parent=1 // pred_check
      _
    $region27: #{tpu_custom_call.1} parent=1 // pred_check_branch
      %231 = sbr.rel (0) target = $region29
    $region28: #{tpu_custom_call.1} parent=1 // pred_region
      %s233 = ssub.s32 32, 32
      %234 = vsyncadd [#allocation4], %s233
      %s236 = sshll.u32 [#allocation7], 4
      %s237 = int_to_ptr.vmem [resolvable:$true] %s236
      %239 = dma.vmem_to_hbm [thread:$0]  %s237, 32, %s4, [#allocation4]
    $region29: #{tpu_custom_call.1} parent=1 // pred_fallthru
      _
    // Predicated region
    $region30: #{tpu_custom_call.1} parent=1 // pred_check
      _
    $region31: #{tpu_custom_call.1} parent=1 // pred_check_branch
      %241 = sbr.rel (0) target = $region33
    $region32: #{tpu_custom_call.1} parent=1 // pred_region
      %242 = dma.done [#allocation4], 32
    $region33: #{tpu_custom_call.1} parent=1 // pred_fallthru
      _
    %243 = vsyncpa [#allocation3], 1
    %244 = vsyncpa [#allocation6], 1
    %245 = vsyncpa [#allocation4], 1

</llo_original>
